<compile_context>
chip_gen: v5e
topology: v5e:2x2
jax: 0.10.0
libtpu: 0.0.40
codegen_flags: <defaults>
</compile_context>

<pallas_src>
import numpy as np
import jax
import jax.numpy as jnp
from jax.experimental import pallas as pl
from jax.experimental.pallas import tpu as pltpu


# ---------------------------------------------------------------------------
# Gaussian construction (same numbers as se3cnn, built in float64 on host).
# ---------------------------------------------------------------------------
def gaussian_taps_1d(scale):
    """Normalized 1-D Gaussian taps; outer(w,w,w) == se3cnn's 3-D kernel."""
    sigma = 0.5 * (scale ** 2 - 1) ** 0.5
    size = int(1 + 2 * 2.5 * sigma)
    if size % 2 == 0:
        size += 1
    r = np.arange(size, dtype=np.float64) - size // 2
    g = np.exp(-r ** 2 / (2 * sigma ** 2))
    g = g / g.sum()
    return g, size


def gaussian_kernel_3d(scale, dtype=np.float32):
    """Full 3-D kernel (reference check only), exactly as se3cnn builds it."""
    sigma = 0.5 * (scale ** 2 - 1) ** 0.5
    size = int(1 + 2 * 2.5 * sigma)
    if size % 2 == 0:
        size += 1
    rng = np.arange(size, dtype=np.float64) - size // 2
    x = rng[:, None, None]
    y = rng[None, :, None]
    z = rng[None, None, :]
    k = np.exp(-(x ** 2 + y ** 2 + z ** 2) / (2 * sigma ** 2))
    k = k / k.sum()
    return k.astype(dtype), size


def _toeplitz_1d(in_dim, taps, stride, pad):
    """Banded Toeplitz T (in_dim, out_dim): conv1d with zero padding + stride,
    i.e. out[o] = sum_i in[i] * T[i, o]."""
    size = taps.shape[0]
    out_dim = (in_dim + 2 * pad - size) // stride + 1
    T = np.zeros((in_dim, out_dim), np.float64)
    for o in range(out_dim):
        for k in range(size):
            i = o * stride + k - pad
            if 0 <= i < in_dim:
                T[i, o] += taps[k]
    return T, out_dim


# ---------------------------------------------------------------------------
# Kernel body: two MXU matmuls, no VPU tap loops, no transposes.
# ---------------------------------------------------------------------------
def _make_lowpass_kernel(Nb, X, Xo):
    def kernel(x_ref, wyz_ref, wxT_ref, o_ref):
        # x_ref  : (Nb*X, Y*Z)      input slab (rows = (n, x), lanes = (y, z))
        # wyz_ref: (Y*Z, Yo*Zo)     kron(Ty, Tz) -> joint Y/Z conv + pad + stride
        # wxT_ref: (Xo, X)          Tx^T         -> X conv + pad + stride
        # o_ref  : (Nb*Xo, Yo*Zo)
        x = x_ref[...].astype(jnp.float32)
        # (Y,Z) pass on the MXU: one matmul on the lane axis.
        mid = jnp.dot(x, wyz_ref[...], preferred_element_type=jnp.float32)
        wxT = wxT_ref[...]
        # X pass: per-sample left-matmul (rows mix only within one sample).
        for n in range(Nb):  # Nb is small and static -> unrolled
            blk = mid[n * X:(n + 1) * X, :]                      # (X, Yo*Zo)
            o_ref[n * Xo:(n + 1) * Xo, :] = jnp.dot(
                wxT, blk, preferred_element_type=jnp.float32
            ).astype(o_ref.dtype)
    return kernel


def _pick_batch(N, per_n_bytes, X, Xo, budget=4 << 20):
    """Largest Nb dividing N that keeps blocks tile-aligned, fits a VMEM
    budget (~4 MiB/buffer => <~10 MiB double-buffered, OK even on v5e's
    16 MiB default scoped VMEM), and keeps >=2 grid steps for v7x megacore."""
    def aligned(nb):
        return nb == N or ((nb * X) % 8 == 0 and (nb * Xo) % 8 == 0)
    divs = [d for d in range(1, N + 1) if N % d == 0]
    valid = [d for d in divs if aligned(d) and d * per_n_bytes <= budget]
    if not valid:
        valid = [d for d in divs if aligned(d)] or [N]
    multi = [d for d in valid if N // d >= 2]
    return max(multi) if multi else max(valid)


# ---------------------------------------------------------------------------
# Wrapper
# ---------------------------------------------------------------------------
def low_pass_filter(image, scale, stride=1):
    """Pallas-backed equivalent of se3cnn low_pass_filter. image: [..., x, y, z]."""
    if scale <= 1:
        assert stride == 1
        return image

    w1, size = gaussian_taps_1d(scale)
    pad = size // 2

    *lead, X, Y, Z = image.shape
    N = int(np.prod(lead)) if lead else 1
    orig_dtype = image.dtype

    # Toeplitz matrices encode zero padding AND stride for each axis.
    Tx, Xo = _toeplitz_1d(X, w1, stride, pad)
    Ty, Yo = _toeplitz_1d(Y, w1, stride, pad)
    Tz, Zo = _toeplitz_1d(Z, w1, stride, pad)
    Wyz = np.kron(Ty, Tz).astype(np.float32)   # (Y*Z, Yo*Zo)
    WxT = Tx.T.astype(np.float32)              # (Xo, X)

    # Ship bf16 over HBM if the caller is bf16; compute in f32 inside.
    if image.dtype in (jnp.dtype(jnp.bfloat16), jnp.dtype(jnp.float32)):
        in_dtype = image.dtype
    else:
        in_dtype = jnp.dtype(jnp.float32)

    # Lane-dense 2-D presentation (contiguous reshape, free in XLA).
    x2 = image.reshape(N * X, Y * Z).astype(in_dtype)

    itemsize = jnp.dtype(in_dtype).itemsize
    per_n_bytes = X * Y * Z * itemsize + Xo * Yo * Zo * itemsize
    Nb = _pick_batch(N, per_n_bytes, X, Xo)
    grid = (N // Nb,)

    out2 = pl.pallas_call(
        _make_lowpass_kernel(Nb, X, Xo),
        out_shape=jax.ShapeDtypeStruct((N * Xo, Yo * Zo), in_dtype),
        grid_spec=pltpu.PrefetchScalarGridSpec(
            num_scalar_prefetch=0,
            grid=grid,
            in_specs=[
                pl.BlockSpec((Nb * X, Y * Z), lambda i: (i, 0)),
                pl.BlockSpec((Y * Z, Yo * Zo), lambda i: (0, 0)),
                pl.BlockSpec((Xo, X), lambda i: (0, 0)),
            ],
            out_specs=pl.BlockSpec((Nb * Xo, Yo * Zo), lambda i: (i, 0)),
        ),
        compiler_params=pltpu.CompilerParams(dimension_semantics=("parallel",)),
    )(x2, jnp.asarray(Wyz), jnp.asarray(WxT))

    out = out2.reshape(*lead, Xo, Yo, Zo).astype(orig_dtype)
    return out


class LowPass:
    """JAX/Pallas port of the PyTorch LowPass module."""

    def __init__(self, scale, stride):
        self.scale = scale
        self.stride = stride

    def __call__(self, inp):
        return low_pass_filter(inp, self.scale, self.stride)


if __name__ == "__main__":
    key = jax.random.PRNGKey(0)
    B, C, S = 2, 4, 8                      # small voxel grid like the tetris example
    x = jax.random.normal(key, (B, C, S, S, S), dtype=jnp.float32)

    for scale, stride in [(2, 2), (2, 1)]:
        module = LowPass(scale, stride)
        out = jax.block_until_ready(module(x))

        # Pure-JAX reference (XLA conv with the full 3-D kernel).
        w3, size = gaussian_kernel_3d(scale)
        pad = size // 2
        ref = jax.lax.conv_general_dilated(
            x.reshape(B * C, 1, S, S, S),
            jnp.asarray(w3).reshape(1, 1, size, size, size),
            window_strides=(stride, stride, stride),
            padding=[(pad, pad)] * 3,
            dimension_numbers=("NCDHW", "OIDHW", "NCDHW"),
            precision=jax.lax.Precision.HIGHEST,
        ).reshape(B, C, *out.shape[-3:])
        np.testing.assert_allclose(np.asarray(out), np.asarray(ref),
                                   rtol=5e-4, atol=5e-4)

    print("KERNEL_OK")
</pallas_src>

<mosaic_0001>
module attributes {stable_mosaic.version = 11 : i64} {
  func.func @kernel(%arg0: i32, %arg1: memref<32x64xf32, #tpu.memory_space<vmem>>, %arg2: memref<64x16xf32, #tpu.memory_space<vmem>>, %arg3: memref<4x8xf32, #tpu.memory_space<vmem>>, %arg4: memref<16x16xf32, #tpu.memory_space<vmem>>) attributes {dimension_semantics = [#tpu.dimension_semantics<parallel>], iteration_bounds = array<i64: 2>, scalar_prefetch = 0 : i64, scratch_operands = 0 : i64, tpu.core_type = #tpu.core_type<tc>, window_params = [{transform_indices = @transform_0, window_bounds = array<i64: 32, 64>}, {pipeline_mode = #tpu.pipeline_mode<synchronous>, transform_indices = @transform_1, window_bounds = array<i64: 64, 16>}, {pipeline_mode = #tpu.pipeline_mode<synchronous>, transform_indices = @transform_2, window_bounds = array<i64: 4, 8>}, {transform_indices = @transform_3, window_bounds = array<i64: 16, 16>}]} {
    %c0 = arith.constant 0 : index
    %c0_0 = arith.constant 0 : index
    %0 = vector.load %arg1[%c0, %c0_0] : memref<32x64xf32, #tpu.memory_space<vmem>>, vector<32x64xf32>
    %c0_1 = arith.constant 0 : index
    %c0_2 = arith.constant 0 : index
    %1 = vector.load %arg2[%c0_1, %c0_2] : memref<64x16xf32, #tpu.memory_space<vmem>>, vector<64x16xf32>
    %cst = arith.constant dense<0.000000e+00> : vector<32x16xf32>
    %2 = tpu.matmul %0, %1, %cst {dimension_numbers = #tpu.dot_dimension_numbers<[1], [0], [0], [1], [0, 0, 1, 1], [], []>} : vector<32x64xf32>, vector<64x16xf32>, vector<32x16xf32> -> vector<32x16xf32>
    %c0_3 = arith.constant 0 : index
    %c0_4 = arith.constant 0 : index
    %3 = vector.load %arg3[%c0_3, %c0_4] : memref<4x8xf32, #tpu.memory_space<vmem>>, vector<4x8xf32>
    %4 = vector.extract_strided_slice %2 {offsets = [0, 0], sizes = [8, 16], strides = [1, 1]} : vector<32x16xf32> to vector<8x16xf32>
    %cst_5 = arith.constant dense<0.000000e+00> : vector<4x16xf32>
    %5 = tpu.matmul %3, %4, %cst_5 {dimension_numbers = #tpu.dot_dimension_numbers<[1], [0], [0], [1], [0, 0, 1, 1], [], []>} : vector<4x8xf32>, vector<8x16xf32>, vector<4x16xf32> -> vector<4x16xf32>
    %c0_6 = arith.constant 0 : index
    %c0_7 = arith.constant 0 : index
    %6 = vector.load %arg4[%c0_6, %c0_7] : memref<16x16xf32, #tpu.memory_space<vmem>>, vector<4x16xf32>
    tpu.vector_store %arg4[%c0_6, %c0_7], %5 {strides = array<i32>} : memref<16x16xf32, #tpu.memory_space<vmem>>, vector<4x16xf32>,
    %7 = vector.extract_strided_slice %2 {offsets = [8, 0], sizes = [8, 16], strides = [1, 1]} : vector<32x16xf32> to vector<8x16xf32>
    %cst_8 = arith.constant dense<0.000000e+00> : vector<4x16xf32>
    %8 = tpu.matmul %3, %7, %cst_8 {dimension_numbers = #tpu.dot_dimension_numbers<[1], [0], [0], [1], [0, 0, 1, 1], [], []>} : vector<4x8xf32>, vector<8x16xf32>, vector<4x16xf32> -> vector<4x16xf32>
    %c4 = arith.constant 4 : index
    %c0_9 = arith.constant 0 : index
    %9 = vector.load %arg4[%c4, %c0_9] : memref<16x16xf32, #tpu.memory_space<vmem>>, vector<4x16xf32>
    tpu.vector_store %arg4[%c4, %c0_9], %8 {strides = array<i32>} : memref<16x16xf32, #tpu.memory_space<vmem>>, vector<4x16xf32>,
    %10 = vector.extract_strided_slice %2 {offsets = [16, 0], sizes = [8, 16], strides = [1, 1]} : vector<32x16xf32> to vector<8x16xf32>
    %cst_10 = arith.constant dense<0.000000e+00> : vector<4x16xf32>
    %11 = tpu.matmul %3, %10, %cst_10 {dimension_numbers = #tpu.dot_dimension_numbers<[1], [0], [0], [1], [0, 0, 1, 1], [], []>} : vector<4x8xf32>, vector<8x16xf32>, vector<4x16xf32> -> vector<4x16xf32>
    %c8 = arith.constant 8 : index
    %c0_11 = arith.constant 0 : index
    %12 = vector.load %arg4[%c8, %c0_11] : memref<16x16xf32, #tpu.memory_space<vmem>>, vector<4x16xf32>
    tpu.vector_store %arg4[%c8, %c0_11], %11 {strides = array<i32>} : memref<16x16xf32, #tpu.memory_space<vmem>>, vector<4x16xf32>,
    %13 = vector.extract_strided_slice %2 {offsets = [24, 0], sizes = [8, 16], strides = [1, 1]} : vector<32x16xf32> to vector<8x16xf32>
    %cst_12 = arith.constant dense<0.000000e+00> : vector<4x16xf32>
    %14 = tpu.matmul %3, %13, %cst_12 {dimension_numbers = #tpu.dot_dimension_numbers<[1], [0], [0], [1], [0, 0, 1, 1], [], []>} : vector<4x8xf32>, vector<8x16xf32>, vector<4x16xf32> -> vector<4x16xf32>
    %c12 = arith.constant 12 : index
    %c0_13 = arith.constant 0 : index
    %15 = vector.load %arg4[%c12, %c0_13] : memref<16x16xf32, #tpu.memory_space<vmem>>, vector<4x16xf32>
    tpu.vector_store %arg4[%c12, %c0_13], %14 {strides = array<i32>} : memref<16x16xf32, #tpu.memory_space<vmem>>, vector<4x16xf32>,
    return
  }
  func.func @transform_0(%arg0: i32) -> (i32, i32) {
    %c0_i32 = arith.constant 0 : i32
    %c0_i32_0 = arith.constant 0 : i32
    return %arg0, %c0_i32 : i32, i32
  }
  func.func @transform_1(%arg0: i32) -> (i32, i32) {
    %c0_i32 = arith.constant 0 : i32
    %c0_i32_0 = arith.constant 0 : i32
    %c0_i32_1 = arith.constant 0 : i32
    return %c0_i32, %c0_i32_0 : i32, i32
  }
  func.func @transform_2(%arg0: i32) -> (i32, i32) {
    %c0_i32 = arith.constant 0 : i32
    %c0_i32_0 = arith.constant 0 : i32
    %c0_i32_1 = arith.constant 0 : i32
    return %c0_i32, %c0_i32_0 : i32, i32
  }
  func.func @transform_3(%arg0: i32) -> (i32, i32) {
    %c0_i32 = arith.constant 0 : i32
    %c0_i32_0 = arith.constant 0 : i32
    return %arg0, %c0_i32 : i32, i32
  }
}

</mosaic_0001>

<llo_original>
// kernel: tpu_custom_call.1
$region0: #{tpu_custom_call.1}
  #allocation0 [shape = 'u32[]', space=smem, size = 0x4, offset = 0x4, fixed_abs, tag = 'smem constant byte address 0x4 - core index']
  #allocation1 [shape = 'u32[72,128]{1,0:T(1,128)}', space=vmem, size = 0x9000, scoped, tag = 'internal scratch']
  %s0 = inlined_call_operand.vmem [shape: f32[64,64], index: 0, kind: input, shape index: {}]
  %s1 = inlined_call_operand.vmem [shape: f32[64,16], index: 1, kind: input, shape index: {}]
  %s2 = inlined_call_operand.vmem [shape: f32[4,8], index: 2, kind: input, shape index: {}]
  %s3 = inlined_call_operand.vmem [shape: f32[32,16], index: 3, kind: output, shape index: {}]
  %s4 = sld [smem:[#allocation0]]
  $region45: #{tpu_custom_call.1} parent=0
    _
  %s6 = ssub.s32 1, %s4
  %s7 = scalar_select 0, %s6, %s4
  loop: start=0, step=1, limit=4
  $region2: #{tpu_custom_call.1} parent=0 // loop_pre_header
    _
  $region3: #{tpu_custom_call.1} parent=0 // loop_header
    %s9 = sphi 0, %s13
    %p10 = scmp.ge.s32.totalorder %s9, 4
    %s19 = sphi 0, %s21
    %s22 = sphi 0, %s19
    %s23 = sphi 0, %s22
    %s39 = sphi 0, %s23
    %s43 = sphi 0, %s43
    %s45 = sphi 0, %s43
    %s46 = sphi 0, %s45
    %s60 = sphi 0, %s46
    %s64 = sphi 0, %s64
    %s66 = sphi 0, %s64
    %s67 = sphi 0, %s66
    %s81 = sphi 0, %s67
    %s87 = sphi 0, %s89
    %s90 = sphi 0, %s87
    %s91 = sphi 0, %s90
    %s107 = sphi 0, %s91
  $region4: #{tpu_custom_call.1} parent=0 // loop_header_branch
    %12 = sbr.rel (%p10) target = $region8
  $region5: #{tpu_custom_call.1} parent=0 // loop_body
    %s14 = ssub.s32 %s9, 1
    %s15 = ssub.s32 %s9, 2
    %s16 = sadd.s32 %s9, 1
    %s17 = ssub.s32 %s9, %s16
    %p18 = scmp.eq.s32.totalorder %s17, 0
    %s20 = sadd.s32 %s19, 1
    %s21 = scalar_select %p18, %s19, %s20
    %p24 = pneg %p18
    %p25 = scmp.eq.s32.totalorder %s9, 1
    %p26 = por %p24, %p25
    %p27 = scmp.ne.s32.totalorder %s19, %s22
    %p28 = scmp.eq.s32.totalorder %s9, 0
    %p29 = por %p27, %p28
    %p30 = scmp.ne.s32.totalorder %s19, %s22
    %p31 = scmp.eq.s32.totalorder %s14, 1
    %p32 = por %p30, %p31
    %p33 = scmp.ne.s32.totalorder %s22, %s23
    %p34 = scmp.eq.s32.totalorder %s14, 0
    %p35 = por %p33, %p34
    %p36 = scmp.ne.s32.totalorder %s22, %s23
    %p37 = scmp.eq.s32.totalorder %s15, 1
    %p38 = por %p36, %p37
    %p40 = scmp.ne.s32.totalorder %s23, %s39
    %p41 = scmp.eq.s32.totalorder %s15, 0
    %p42 = por %p40, %p41
    %s44 = sadd.s32 %s43, 1
    %p47 = scmp.eq.s32.totalorder %s9, 1
    %p48 = scmp.ne.s32.totalorder %s43, %s45
    %p49 = scmp.eq.s32.totalorder %s9, 0
    %p50 = por %p48, %p49
    %p51 = scmp.ne.s32.totalorder %s43, %s45
    %p52 = scmp.eq.s32.totalorder %s14, 1
    %p53 = por %p51, %p52
    %p54 = scmp.ne.s32.totalorder %s45, %s46
    %p55 = scmp.eq.s32.totalorder %s14, 0
    %p56 = por %p54, %p55
    %p57 = scmp.ne.s32.totalorder %s45, %s46
    %p58 = scmp.eq.s32.totalorder %s15, 1
    %p59 = por %p57, %p58
    %p61 = scmp.ne.s32.totalorder %s46, %s60
    %p62 = scmp.eq.s32.totalorder %s15, 0
    %p63 = por %p61, %p62
    %s65 = sadd.s32 %s64, 1
    %p68 = scmp.eq.s32.totalorder %s9, 1
    %p69 = scmp.ne.s32.totalorder %s64, %s66
    %p70 = scmp.eq.s32.totalorder %s9, 0
    %p71 = por %p69, %p70
    %p72 = scmp.ne.s32.totalorder %s64, %s66
    %p73 = scmp.eq.s32.totalorder %s14, 1
    %p74 = por %p72, %p73
    %p75 = scmp.ne.s32.totalorder %s66, %s67
    %p76 = scmp.eq.s32.totalorder %s14, 0
    %p77 = por %p75, %p76
    %p78 = scmp.ne.s32.totalorder %s66, %s67
    %p79 = scmp.eq.s32.totalorder %s15, 1
    %p80 = por %p78, %p79
    %p82 = scmp.ne.s32.totalorder %s67, %s81
    %p83 = scmp.eq.s32.totalorder %s15, 0
    %p84 = por %p82, %p83
    %s85 = ssub.s32 %s9, %s16
    %p86 = scmp.eq.s32.totalorder %s85, 0
    %s88 = sadd.s32 %s87, 1
    %s89 = scalar_select %p86, %s87, %s88
    %p92 = pneg %p86
    %p93 = scmp.eq.s32.totalorder %s9, 1
    %p94 = por %p92, %p93
    %p95 = scmp.ne.s32.totalorder %s87, %s90
    %p96 = scmp.eq.s32.totalorder %s9, 0
    %p97 = por %p95, %p96
    %p98 = scmp.ne.s32.totalorder %s87, %s90
    %p99 = scmp.eq.s32.totalorder %s14, 1
    %p100 = por %p98, %p99
    %p101 = scmp.ne.s32.totalorder %s90, %s91
    %p102 = scmp.eq.s32.totalorder %s14, 0
    %p103 = por %p101, %p102
    %p104 = scmp.ne.s32.totalorder %s90, %s91
    %p105 = scmp.eq.s32.totalorder %s15, 1
    %p106 = por %p104, %p105
    %p108 = scmp.ne.s32.totalorder %s91, %s107
    %p109 = scmp.eq.s32.totalorder %s15, 0
    %p110 = por %p108, %p109
    %p111 = scmp.le.s32.totalorder 1, %s9
    %p112 = scmp.lt.s32.totalorder %s9, 3
    %p113 = pnand %p111, %p112
    %p114 = pneg %p113
    // Predicated region
    $region9: #{tpu_custom_call.1} parent=5 // pred_check
      _
    $region10: #{tpu_custom_call.1} parent=5 // pred_check_branch
      %116 = sbr.rel (%p113) target = $region12
    $region11: #{tpu_custom_call.1} parent=5 // pred_region
      %s117 = ssub.s32 %s9, 1
      // Predicated region
      $region13: #{tpu_custom_call.1} parent=11 // pred_check
        %p118 = pneg %p56
      $region14: #{tpu_custom_call.1} parent=11 // pred_check_branch
        %120 = sbr.rel (%p118) target = $region16
      $region15: #{tpu_custom_call.1} parent=11 // pred_region
        _
      $region16: #{tpu_custom_call.1} parent=11 // pred_fallthru
        _
      // Predicated region
      $region17: #{tpu_custom_call.1} parent=11 // pred_check
        %p121 = pneg %p77
      $region18: #{tpu_custom_call.1} parent=11 // pred_check_branch
        %123 = sbr.rel (%p121) target = $region20
      $region19: #{tpu_custom_call.1} parent=11 // pred_region
        _
      $region20: #{tpu_custom_call.1} parent=11 // pred_fallthru
        _
    $region12: #{tpu_custom_call.1} parent=5 // pred_fallthru
      _
    %p124 = scmp.lt.s32.totalorder %s9, 2
    // Predicated region
    $region21: #{tpu_custom_call.1} parent=5 // pred_check
      %p125 = pneg %p124
    $region22: #{tpu_custom_call.1} parent=5 // pred_check_branch
      %127 = sbr.rel (%p125) target = $region24
    $region23: #{tpu_custom_call.1} parent=5 // pred_region
      // Predicated region
      $region25: #{tpu_custom_call.1} parent=23 // pred_check
        %p128 = pneg %p29
      $region26: #{tpu_custom_call.1} parent=23 // pred_check_branch
        %130 = sbr.rel (%p128) target = $region28
      $region27: #{tpu_custom_call.1} parent=23 // pred_region
        %s131 = smul.u32 4, %s9
        %p132 = scmp.lt.s32.totalorder %s131, 7
        %s133 = scalar_select %p132, %s131, 7
        %s134 = smul.addr %s133, 8
        %s135 = scalar_lea.vmem %s0, %s134
        %s136 = smul.u32 4, %s9
      $region28: #{tpu_custom_call.1} parent=23 // pred_fallthru
        _
    $region24: #{tpu_custom_call.1} parent=5 // pred_fallthru
      _
    %p137 = scmp.le.s32.totalorder 1, %s9
    %p138 = scmp.lt.s32.totalorder %s9, 3
    %p139 = pnand %p137, %p138
    %p140 = pneg %p139
    // Predicated region
    $region29: #{tpu_custom_call.1} parent=5 // pred_check
      _
    $region30: #{tpu_custom_call.1} parent=5 // pred_check_branch
      %142 = sbr.rel (%p139) target = $region32
    $region31: #{tpu_custom_call.1} parent=5 // pred_region
      %s143 = ssub.s32 %s9, 1
      %s144 = smul.u32 4, %s14
      %p145 = scmp.lt.s32.totalorder %s144, 7
      %s146 = scalar_select %p145, %s144, 7
      %s147 = smul.addr %s146, 8
      %s148 = scalar_lea.vmem %s0, %s147
      %p149 = pneg %p35
      %p150 = pneg %p32
      %p151 = pneg %p56
      %p152 = pneg %p53
      %p153 = pneg %p77
      %p154 = pneg %p74
      %p155 = pneg %p103
      %p156 = pneg %p100
      %s157 = smul.u32 2, %s14
      %p158 = scmp.lt.s32.totalorder %s157, 3
      %s159 = scalar_select %p158, %s157, 3
      %s160 = smul.addr %s159, 8
      %s161 = scalar_lea.vmem %s3, %s160
      %s162 = smul.u32 4, %s14
      %p163 = scmp.lt.s32.totalorder %s162, 7
      %s164 = scalar_select %p163, %s162, 7
      %s165 = smul.addr %s164, 8
      %s166 = scalar_lea.vmem %s0, %s165
      %s167 = smul.u32 4, %s14
      %s168 = smul.u32 2, %s14
      %p169 = scmp.lt.s32.totalorder %s168, 3
      %s170 = scalar_select %p169, %s168, 3
      %s171 = smul.addr %s170, 8
      %s172 = scalar_lea.vmem %s3, %s171
      %s173 = smul.u32 2, %s14
      %v174 = vld [vmem:[%s166] sm:$0xff]
      %v175 = vld [vmem:[%s166 + $0x8] sm:$0xff]
      %v176 = vld [vmem:[%s166 + $0x10] sm:$0xff]
      %v177 = vld [vmem:[%s166 + $0x18] sm:$0xff]
      %v178 = vld [vmem:[%s1] sm:$0xff]
      %v179 = vld [vmem:[%s1 + $0x8] sm:$0xff]
      %v180 = vld [vmem:[%s1 + $0x10] sm:$0xff]
      %v181 = vld [vmem:[%s1 + $0x18] sm:$0xff]
      %v182 = vld [vmem:[%s1 + $0x20] sm:$0xff]
      %v183 = vld [vmem:[%s1 + $0x28] sm:$0xff]
      %v184 = vld [vmem:[%s1 + $0x30] sm:$0xff]
      %v185 = vld [vmem:[%s1 + $0x38] sm:$0xff]
      %vm186 = vcmask 523264
      %v188 = vsel %vm186, %v174, 0
      %v191 = vsel %vm186, %v175, 0
      %v194 = vsel %vm186, %v176, 0
      %v197 = vsel %vm186, %v177, 0
      %199 = vmatpush.msra.mxu0 0.0
      %200 = vmatpush.msra.mxu0 0.0
      %201 = vmatpush.msra.mxu0 0.0
      %202 = vmatpush.msra.mxu0 0.0
      %203 = vmatpush.msra.mxu0 0.0
      %204 = vmatpush.msra.mxu0 0.0
      %205 = vmatpush.msra.mxu0 0.0
      %206 = vmatpush.msra.mxu0 0.0
      %207 = vmatpush.msra.mxu0 %v185
      %208 = vmatpush.msra.mxu0 %v184
      %209 = vmatpush.msra.mxu0 %v183
      %210 = vmatpush.msra.mxu0 %v182
      %211 = vmatpush.msra.mxu0 %v181
      %212 = vmatpush.msra.mxu0 %v180
      %213 = vmatpush.msra.mxu0 %v179
      %214 = vmatpush.msra.mxu0 %v178
      %215 = vmatmul.f32.gmra.mxu0 %v188
      %v216 = vpop.f32.mrf.mxu0
      %v217 = vadd.f32 0.0, %v216
      %218 = vmatmul.f32.gmra.mxu0 %v191
      %v219 = vpop.f32.mrf.mxu0
      %v220 = vadd.f32 0.0, %v219
      %221 = vmatmul.f32.gmra.mxu0 %v194
      %v222 = vpop.f32.mrf.mxu0
      %v223 = vadd.f32 0.0, %v222
      %224 = vmatmul.f32.gmra.mxu0 %v197
      %v225 = vpop.f32.mrf.mxu0
      %v226 = vadd.f32 0.0, %v225
      %227 = vdwg.mxu0
      %v228 = vld [vmem:[%s2] sm:$0xf]
      %vm229 = vcmask 64512
      %v231 = vsel %vm229, %v228, 0
      %233 = vmatpush.msra.mxu0 0.0
      %234 = vmatpush.msra.mxu0 0.0
      %235 = vmatpush.msra.mxu0 0.0
      %236 = vmatpush.msra.mxu0 0.0
      %237 = vmatpush.msra.mxu0 0.0
      %238 = vmatpush.msra.mxu0 0.0
      %239 = vmatpush.msra.mxu0 0.0
      %240 = vmatpush.msra.mxu0 0.0
      %241 = vmatpush.msra.mxu0 0.0
      %242 = vmatpush.msra.mxu0 0.0
      %243 = vmatpush.msra.mxu0 0.0
      %244 = vmatpush.msra.mxu0 0.0
      %245 = vmatpush.msra.mxu0 0.0
      %246 = vmatpush.msra.mxu0 0.0
      %247 = vmatpush.msra.mxu0 0.0
      %248 = vmatpush.msra.mxu0 %v217
      %249 = vmatmul.f32.gmra.mxu0 %v231
      %v250 = vpop.f32.mrf.mxu0
      %v251 = vadd.f32 0.0, %v250
      %252 = vdwg.mxu0
      %vm253 = vcmask 125952
      %254 = vst.msk [vmem:[%s172] sm:$0xf] %vm253, %v251
      %255 = vmatpush.msra.mxu0 0.0
      %256 = vmatpush.msra.mxu0 0.0
      %257 = vmatpush.msra.mxu0 0.0
      %258 = vmatpush.msra.mxu0 0.0
      %259 = vmatpush.msra.mxu0 0.0
      %260 = vmatpush.msra.mxu0 0.0
      %261 = vmatpush.msra.mxu0 0.0
      %262 = vmatpush.msra.mxu0 0.0
      %263 = vmatpush.msra.mxu0 0.0
      %264 = vmatpush.msra.mxu0 0.0
      %265 = vmatpush.msra.mxu0 0.0
      %266 = vmatpush.msra.mxu0 0.0
      %267 = vmatpush.msra.mxu0 0.0
      %268 = vmatpush.msra.mxu0 0.0
      %269 = vmatpush.msra.mxu0 0.0
      %270 = vmatpush.msra.mxu0 %v220
      %271 = vmatmul.f32.gmra.mxu0 %v231
      %v272 = vpop.f32.mrf.mxu0
      %v273 = vadd.f32 0.0, %v272
      %274 = vdwg.mxu0
      %275 = vst.msk [vmem:[%s172 + $0x4] sm:$0xf] %vm253, %v273
      %276 = vmatpush.msra.mxu0 0.0
      %277 = vmatpush.msra.mxu0 0.0
      %278 = vmatpush.msra.mxu0 0.0
      %279 = vmatpush.msra.mxu0 0.0
      %280 = vmatpush.msra.mxu0 0.0
      %281 = vmatpush.msra.mxu0 0.0
      %282 = vmatpush.msra.mxu0 0.0
      %283 = vmatpush.msra.mxu0 0.0
      %284 = vmatpush.msra.mxu0 0.0
      %285 = vmatpush.msra.mxu0 0.0
      %286 = vmatpush.msra.mxu0 0.0
      %287 = vmatpush.msra.mxu0 0.0
      %288 = vmatpush.msra.mxu0 0.0
      %289 = vmatpush.msra.mxu0 0.0
      %290 = vmatpush.msra.mxu0 0.0
      %291 = vmatpush.msra.mxu0 %v223
      %292 = vmatmul.f32.gmra.mxu0 %v231
      %v293 = vpop.f32.mrf.mxu0
      %v294 = vadd.f32 0.0, %v293
      %295 = vdwg.mxu0
      %296 = vst.msk [vmem:[%s172 + $0x8] sm:$0xf] %vm253, %v294
      %297 = vmatpush.msra.mxu0 0.0
      %298 = vmatpush.msra.mxu0 0.0
      %299 = vmatpush.msra.mxu0 0.0
      %300 = vmatpush.msra.mxu0 0.0
      %301 = vmatpush.msra.mxu0 0.0
      %302 = vmatpush.msra.mxu0 0.0
      %303 = vmatpush.msra.mxu0 0.0
      %304 = vmatpush.msra.mxu0 0.0
      %305 = vmatpush.msra.mxu0 0.0
      %306 = vmatpush.msra.mxu0 0.0
      %307 = vmatpush.msra.mxu0 0.0
      %308 = vmatpush.msra.mxu0 0.0
      %309 = vmatpush.msra.mxu0 0.0
      %310 = vmatpush.msra.mxu0 0.0
      %311 = vmatpush.msra.mxu0 0.0
      %312 = vmatpush.msra.mxu0 %v226
      %313 = vmatmul.f32.gmra.mxu0 %v231
      %v314 = vpop.f32.mrf.mxu0
      %v315 = vadd.f32 0.0, %v314
      %316 = vdwg.mxu0
      %317 = vst.msk [vmem:[%s172 + $0xc] sm:$0xf] %vm253, %v315
      %s318 = smul.u32 2, %s14
      %p319 = scmp.lt.s32.totalorder %s318, 3
      %s320 = scalar_select %p319, %s318, 3
      %s321 = smul.addr %s320, 8
      %s322 = scalar_lea.vmem %s3, %s321
      // Predicated region
      $region33: #{tpu_custom_call.1} parent=31 // pred_check
        %p323 = pneg %p100
      $region34: #{tpu_custom_call.1} parent=31 // pred_check_branch
        %325 = sbr.rel (%p323) target = $region36
      $region35: #{tpu_custom_call.1} parent=31 // pred_region
        %s326 = smul.u32 2, %s14
      $region36: #{tpu_custom_call.1} parent=31 // pred_fallthru
        _
    $region32: #{tpu_custom_call.1} parent=5 // pred_fallthru
      _
    %p327 = scmp.le.s32.totalorder 2, %s9
    // Predicated region
    $region37: #{tpu_custom_call.1} parent=5 // pred_check
      %p328 = pneg %p327
    $region38: #{tpu_custom_call.1} parent=5 // pred_check_branch
      %330 = sbr.rel (%p328) target = $region40
    $region39: #{tpu_custom_call.1} parent=5 // pred_region
      %s331 = ssub.s32 %s9, 2
      // Predicated region
      $region41: #{tpu_custom_call.1} parent=39 // pred_check
        %p332 = pneg %p106
      $region42: #{tpu_custom_call.1} parent=39 // pred_check_branch
        %334 = sbr.rel (%p332) target = $region44
      $region43: #{tpu_custom_call.1} parent=39 // pred_region
        %s335 = smul.u32 2, %s15
        %p336 = scmp.lt.s32.totalorder %s335, 3
        %s337 = scalar_select %p336, %s335, 3
        %s338 = smul.addr %s337, 8
        %s339 = scalar_lea.vmem %s3, %s338
      $region44: #{tpu_custom_call.1} parent=39 // pred_fallthru
        _
    $region40: #{tpu_custom_call.1} parent=5 // pred_fallthru
      _
  $region6: #{tpu_custom_call.1} parent=0 // loop_footer
    %s13 = sadd.s32 1, %s9
  $region7: #{tpu_custom_call.1} parent=0 // loop_footer_branch
    %8 = sbr.rel target = $region3
  $region8: #{tpu_custom_call.1} parent=0 // loop_exit
    _

</llo_original>
